<compile_context>
chip_gen: v7x
topology: tpu7x:2x2x1
jax: 0.10.0
libtpu: 0.0.40
codegen_flags: <defaults>
</compile_context>

<pallas_src>
import math
import numpy as np
import jax
import jax.numpy as jnp
from jax.experimental import pallas as pl
from jax.experimental.pallas import tpu as pltpu

LOG2PI = math.log(2.0 * math.pi)

# Model hyper-parameters (small, consistent with the module's constructor)
BATCH = 8
INPUT_DIM = 64
HIDDEN_DIMS = (64, 32)     # encoder hidden dims; decoder uses reversed order
LATENT_DIM = 16
N_FLOWS = 2

H0, H1 = HIDDEN_DIMS
Z = LATENT_DIM

MATMUL_DTYPE = jnp.float32     # bf16 on v6e/v7x at scale (MXU operands only on v5e)

# ---------------------------------------------------------------------------
# Single packed-parameter slab, 64 lanes wide. All row offsets are multiples
# of 8; every weight matrix region is zero-padded to 64 lanes (and where needed
# to 64 rows) so all matmul/bias math stays 64-lane aligned with no lane
# slicing of refs.  Zero padding keeps the math exact.
# ---------------------------------------------------------------------------
P_WE0 = 0       # we0  : (64, 64)
P_WE1 = 64      # we1  : (64, 32) padded cols -> (64, 64)
P_WMLV = 128    # wmlv : (32, 32) fused [mu|log_var] padded -> (64, 64) region
P_WD0 = 192     # wd0  : (16, 32) padded cols -> (16, 64)
P_WD1 = 208     # wd1  : (32, 64) padded rows -> (64, 64) region
P_WREC = 272    # wrec : (64, 64)
P_FWT = 336     # flow w transposed : (Z, N_FLOWS) padded -> (16, 64)
P_BE0 = 352     # bias rows, each at an 8-aligned sublane offset, zero-padded lanes
P_BE1 = 360
P_BMLV = 368
P_BD0 = 376
P_BD1 = 384
P_BREC = 392
P_FL = 400      # flow params (K, 2Z+1) = [u | w | b] padded -> (K, 64)
P_ROWS = 408    # multiple of 8

OUT_W = 128     # lane-dense combined output [x_mu(64) | qz | pz | pad]


# ---------------------------------------------------------------------------
# Fused kernel: one batch tile per grid step, all params VMEM-resident.
# ---------------------------------------------------------------------------
def _vae_flows_kernel(act_ref, p_ref, out_ref):
    TB = act_ref.shape[1]

    def mm(a, w):
        # astype is a no-op for the default f32 path
        return jnp.dot(a.astype(MATMUL_DTYPE), w.astype(MATMUL_DTYPE),
                       preferred_element_type=jnp.float32)

    def wt(row, rows):
        return p_ref[pl.ds(row, rows), :]

    def bias(row):
        # 8-aligned (1, 64) row; broadcast over sublanes in the add.
        return p_ref[pl.ds(row, 1), :]

    x = act_ref[0]                         # (TB, 64)
    eps = act_ref[1][:, :Z]                # (TB, Z), zero-padded lanes dropped

    # ---- Encoder MLP (ReLU hidden layers) ----
    h = jnp.maximum(mm(x, wt(P_WE0, 64)) + bias(P_BE0), 0.0)        # (TB, 64)
    h = jnp.maximum(mm(h, wt(P_WE1, 64)) + bias(P_BE1), 0.0)        # (TB, 64), lanes 32: = 0

    # ---- Fused mu / log_var head (padded 64x64 matmul, split with static slices) ----
    mlv = mm(h, wt(P_WMLV, 64)) + bias(P_BMLV)                      # (TB, 64)
    mu = mlv[:, :Z]
    log_var = mlv[:, Z:2 * Z]

    # ---- Reparametrization trick: z0 = mu + exp(0.5*log_var) * eps ----
    std = jnp.exp(0.5 * log_var)
    z0 = mu + std * eps

    # ---- Planar flows: per-flow params vectorized over K, hoisted out of chain ----
    fl = p_ref[pl.ds(P_FL, N_FLOWS), :]             # (K, 64)
    fu = fl[:, :Z]                                  # (K, Z)
    fw = fl[:, Z:2 * Z]                             # (K, Z)
    fb = fl[:, 2 * Z:2 * Z + 1]                     # (K, 1)
    wu = jnp.sum(fw * fu, axis=-1, keepdims=True)          # (K, 1)
    w_norm_sq = jnp.sum(fw * fw, axis=-1, keepdims=True)   # (K, 1)
    coef = (jax.nn.softplus(wu) - 1.0 - wu) / w_norm_sq    # (K, 1)
    u_hat = fu + coef * fw                                  # (K, Z)
    wuh = jnp.sum(fw * u_hat, axis=-1, keepdims=True)       # (K, 1) = w . u_hat
    fwT = wt(P_FWT, Z)                                      # (Z, 64): lane k = w of flow k

    z = z0
    logdet = jnp.zeros((TB, 1), jnp.float32)
    for k in range(N_FLOWS):                   # static unroll, K is small
        # z . w_k on the (idle) MXU instead of an XLU cross-lane reduce
        lin = mm(z, fwT)[:, k:k + 1] + fb[k:k + 1, :]                 # (TB, 1)
        t = jnp.tanh(lin)
        z = z + u_hat[k:k + 1, :] * t                                 # (TB, Z)
        det = 1.0 + (1.0 - t * t) * wuh[k:k + 1, :]                   # (TB, 1)
        logdet = logdet + jnp.log(jnp.abs(det) + 1e-8)

    # ---- KL pieces: qz = log q0(z0) - logdet, pz = log N(z_K | 0, I) ----
    # (z0 - mu)^2 * exp(-log_var) == eps^2 exactly -> no exp(-log_var) needed.
    q0 = jnp.sum(-0.5 * LOG2PI - 0.5 * (log_var + 1e-8) - 0.5 * (eps * eps),
                 axis=-1, keepdims=True)
    qz = q0 - logdet
    pz = jnp.sum(-0.5 * LOG2PI - 0.5 * (z * z + 1e-8), axis=-1, keepdims=True)

    # ---- Decoder MLP (ReLU hidden layers) + sigmoid reconstruction ----
    d = jnp.maximum(mm(z, wt(P_WD0, Z)) + bias(P_BD0), 0.0)          # (TB, 64)
    d = jnp.maximum(mm(d, wt(P_WD1, 64)) + bias(P_BD1), 0.0)         # (TB, 64)
    logits = mm(d, wt(P_WREC, 64)) + bias(P_BREC)                    # (TB, 64)
    x_mu = jax.nn.sigmoid(logits)

    # ---- Lane-dense combined output: one unmasked (TB, 128) store ----
    pad = jnp.zeros((TB, OUT_W - INPUT_DIM - 2), jnp.float32)
    out_ref[...] = jnp.concatenate([x_mu, qz, pz, pad], axis=-1)


@jax.jit
def vae_flows_forward(x, eps, param_slab):
    """Fused Pallas forward. Returns (x_mu, qz, pz)."""
    B = x.shape[0]
    tb = B if B <= 512 else 512
    # TODO(synk): pad/mask ragged batches; current harness uses B a multiple of 8.
    assert B % tb == 0 and tb % 8 == 0

    # Pack eps under x into one activation slab -> single input DMA per tile.
    eps_pad = jnp.pad(eps, ((0, 0), (0, INPUT_DIM - Z)))
    act = jnp.stack([x, eps_pad], axis=0)            # (2, B, 64)

    out = pl.pallas_call(
        _vae_flows_kernel,
        out_shape=jax.ShapeDtypeStruct((B, OUT_W), jnp.float32),
        grid=(B // tb,),
        in_specs=[
            pl.BlockSpec((2, tb, INPUT_DIM), lambda i: (0, i, 0)),
            pl.BlockSpec((P_ROWS, 64), lambda i: (0, 0)),   # resident params
        ],
        out_specs=pl.BlockSpec((tb, OUT_W), lambda i: (i, 0)),
        compiler_params=pltpu.CompilerParams(
            dimension_semantics=("parallel",)),
    )(act, param_slab)
    return out[:, :INPUT_DIM], out[:, INPUT_DIM], out[:, INPUT_DIM + 1]


# ---------------------------------------------------------------------------
# Deterministic parameter init (xavier_normal_ weights, zero biases), host-side
# packing into the single fused slab, and a pure-JAX reference for verification.
# ---------------------------------------------------------------------------
def _xavier_normal(key, fan_in, fan_out):
    std = math.sqrt(2.0 / (fan_in + fan_out))
    return std * jax.random.normal(key, (fan_in, fan_out), dtype=jnp.float32)


def init_params(key):
    keys = jax.random.split(key, 16)
    return {
        # encoder
        "we0": _xavier_normal(keys[0], INPUT_DIM, H0),
        "be0": jnp.zeros((1, H0), jnp.float32),
        "we1": _xavier_normal(keys[1], H0, H1),
        "be1": jnp.zeros((1, H1), jnp.float32),
        "wmu": _xavier_normal(keys[2], H1, LATENT_DIM),
        "bmu": jnp.zeros((1, LATENT_DIM), jnp.float32),
        "wlv": _xavier_normal(keys[3], H1, LATENT_DIM),
        "blv": jnp.zeros((1, LATENT_DIM), jnp.float32),
        # planar flow params (non-amortized)
        "fu": 0.1 * jax.random.normal(keys[4], (N_FLOWS, LATENT_DIM), jnp.float32),
        "fw": 0.1 * jax.random.normal(keys[5], (N_FLOWS, LATENT_DIM), jnp.float32),
        "fb": 0.1 * jax.random.normal(keys[6], (N_FLOWS, 1), jnp.float32),
        # decoder (reversed hidden dims: [H1, H0])
        "wd0": _xavier_normal(keys[7], LATENT_DIM, H1),
        "bd0": jnp.zeros((1, H1), jnp.float32),
        "wd1": _xavier_normal(keys[8], H1, H0),
        "bd1": jnp.zeros((1, H0), jnp.float32),
        "wrec": _xavier_normal(keys[9], H0, INPUT_DIM),
        "brec": jnp.zeros((1, INPUT_DIM), jnp.float32),
    }


def pack_params(p):
    """Pack all parameters into a single (P_ROWS, 64) zero-padded slab."""
    slab = jnp.zeros((P_ROWS, 64), jnp.float32)

    def put(s, row, a):
        r, c = a.shape
        return s.at[row:row + r, :c].set(a)

    slab = put(slab, P_WE0, p["we0"])
    slab = put(slab, P_WE1, p["we1"])
    slab = put(slab, P_WMLV, jnp.concatenate([p["wmu"], p["wlv"]], axis=1))
    slab = put(slab, P_WD0, p["wd0"])
    slab = put(slab, P_WD1, p["wd1"])
    slab = put(slab, P_WREC, p["wrec"])
    slab = put(slab, P_FWT, p["fw"].T)                                   # (Z, K)
    slab = put(slab, P_BE0, p["be0"])
    slab = put(slab, P_BE1, p["be1"])
    slab = put(slab, P_BMLV, jnp.concatenate([p["bmu"], p["blv"]], axis=1))
    slab = put(slab, P_BD0, p["bd0"])
    slab = put(slab, P_BD1, p["bd1"])
    slab = put(slab, P_BREC, p["brec"])
    slab = put(slab, P_FL, jnp.concatenate([p["fu"], p["fw"], p["fb"]], axis=1))
    return slab


def reference_forward(x, eps, p):
    h = jax.nn.relu(x @ p["we0"] + p["be0"])
    h = jax.nn.relu(h @ p["we1"] + p["be1"])
    mu = h @ p["wmu"] + p["bmu"]
    log_var = h @ p["wlv"] + p["blv"]
    z0 = mu + jnp.exp(0.5 * log_var) * eps
    z = z0
    logdet = jnp.zeros((x.shape[0], 1), jnp.float32)
    for k in range(N_FLOWS):
        u_k = p["fu"][k:k + 1]
        w_k = p["fw"][k:k + 1]
        b_k = p["fb"][k:k + 1]
        wu = jnp.sum(w_k * u_k)
        u_hat = u_k + ((-1.0 + jax.nn.softplus(wu) - wu) / jnp.sum(w_k * w_k)) * w_k
        lin = jnp.sum(z * w_k, axis=-1, keepdims=True) + b_k
        t = jnp.tanh(lin)
        z = z + u_hat * t
        psi = (1.0 - t * t) * w_k
        det = 1.0 + jnp.sum(psi * u_hat, axis=-1, keepdims=True)
        logdet = logdet + jnp.log(jnp.abs(det) + 1e-8)
    q0 = jnp.sum(-0.5 * LOG2PI - (log_var + 1e-8) * 0.5
                 - ((z0 - mu) ** 2 + 1e-8) / (2.0 * jnp.exp(log_var)),
                 axis=-1)
    qz = q0 - logdet[:, 0]
    pz = jnp.sum(-0.5 * LOG2PI - (z * z + 1e-8) * 0.5, axis=-1)
    d = jax.nn.relu(z @ p["wd0"] + p["bd0"])
    d = jax.nn.relu(d @ p["wd1"] + p["bd1"])
    x_mu = jax.nn.sigmoid(d @ p["wrec"] + p["brec"])
    return x_mu, qz, pz


if __name__ == "__main__":
    key = jax.random.PRNGKey(0)
    k_param, k_x, k_eps = jax.random.split(key, 3)
    params = init_params(k_param)
    slab = pack_params(params)

    x = jax.random.uniform(k_x, (BATCH, INPUT_DIM), dtype=jnp.float32)
    # eps is the reparametrization noise (deterministic input so kernel == reference)
    eps = jax.random.normal(k_eps, (BATCH, LATENT_DIM), dtype=jnp.float32)

    x_mu, qz, pz = vae_flows_forward(x, eps, slab)
    jax.block_until_ready((x_mu, qz, pz))

    x_mu_ref, qz_ref, pz_ref = reference_forward(x, eps, params)
    assert np.allclose(np.asarray(x_mu), np.asarray(x_mu_ref), rtol=1e-5, atol=1e-5)
    assert np.allclose(np.asarray(qz), np.asarray(qz_ref), rtol=1e-4, atol=1e-4)
    assert np.allclose(np.asarray(pz), np.asarray(pz_ref), rtol=1e-4, atol=1e-4)

    print("KERNEL_OK")
</pallas_src>

<mosaic_0001>
module attributes {stable_mosaic.version = 11 : i64} {
  func.func @_vae_flows_kernel(%arg0: i32, %arg1: memref<2x8x64xf32, #tpu.memory_space<vmem>>, %arg2: memref<408x64xf32, #tpu.memory_space<vmem>>, %arg3: memref<8x128xf32, #tpu.memory_space<vmem>>) attributes {dimension_semantics = [#tpu.dimension_semantics<parallel>], iteration_bounds = array<i64: 1>, scalar_prefetch = 0 : i64, scratch_operands = 0 : i64, tpu.core_type = #tpu.core_type<tc>, window_params = [{transform_indices = @transform_0, window_bounds = array<i64: 2, 8, 64>}, {pipeline_mode = #tpu.pipeline_mode<synchronous>, transform_indices = @transform_1, window_bounds = array<i64: 408, 64>}, {transform_indices = @transform_2, window_bounds = array<i64: 8, 128>}]} {
    %c0 = arith.constant 0 : index
    %c0_0 = arith.constant 0 : index
    %c0_1 = arith.constant 0 : index
    %0 = vector.load %arg1[%c0, %c0_0, %c0_1] : memref<2x8x64xf32, #tpu.memory_space<vmem>>, vector<1x8x64xf32>
    %1 = vector.shape_cast %0 : vector<1x8x64xf32> to vector<8x64xf32>
    %c1 = arith.constant 1 : index
    %c0_2 = arith.constant 0 : index
    %c0_3 = arith.constant 0 : index
    %2 = vector.load %arg1[%c1, %c0_2, %c0_3] : memref<2x8x64xf32, #tpu.memory_space<vmem>>, vector<1x8x64xf32>
    %3 = vector.shape_cast %2 : vector<1x8x64xf32> to vector<8x64xf32>
    %4 = vector.extract_strided_slice %3 {offsets = [0, 0], sizes = [8, 16], strides = [1, 1]} : vector<8x64xf32> to vector<8x16xf32>
    %c0_4 = arith.constant 0 : index
    %c0_5 = arith.constant 0 : index
    %5 = vector.load %arg2[%c0_4, %c0_5] : memref<408x64xf32, #tpu.memory_space<vmem>>, vector<64x64xf32>
    %cst = arith.constant dense<0.000000e+00> : vector<8x64xf32>
    %6 = tpu.matmul %1, %5, %cst {dimension_numbers = #tpu.dot_dimension_numbers<[1], [0], [0], [1], [0, 0, 1, 1], [], []>} : vector<8x64xf32>, vector<64x64xf32>, vector<8x64xf32> -> vector<8x64xf32>
    %c352 = arith.constant 352 : index
    %c0_6 = arith.constant 0 : index
    %7 = vector.load %arg2[%c352, %c0_6] : memref<408x64xf32, #tpu.memory_space<vmem>>, vector<1x64xf32>
    %8 = vector.broadcast %7 : vector<1x64xf32> to vector<8x64xf32>
    %9 = arith.addf %6, %8 : vector<8x64xf32>
    %cst_7 = arith.constant 0.000000e+00 : f32
    %10 = vector.broadcast %cst_7 : f32 to vector<8x64xf32>
    %11 = arith.maximumf %9, %10 : vector<8x64xf32>
    %c64 = arith.constant 64 : index
    %c0_8 = arith.constant 0 : index
    %12 = vector.load %arg2[%c64, %c0_8] : memref<408x64xf32, #tpu.memory_space<vmem>>, vector<64x64xf32>
    %cst_9 = arith.constant dense<0.000000e+00> : vector<8x64xf32>
    %13 = tpu.matmul %11, %12, %cst_9 {dimension_numbers = #tpu.dot_dimension_numbers<[1], [0], [0], [1], [0, 0, 1, 1], [], []>} : vector<8x64xf32>, vector<64x64xf32>, vector<8x64xf32> -> vector<8x64xf32>
    %c360 = arith.constant 360 : index
    %c0_10 = arith.constant 0 : index
    %14 = vector.load %arg2[%c360, %c0_10] : memref<408x64xf32, #tpu.memory_space<vmem>>, vector<1x64xf32>
    %15 = vector.broadcast %14 : vector<1x64xf32> to vector<8x64xf32>
    %16 = arith.addf %13, %15 : vector<8x64xf32>
    %cst_11 = arith.constant 0.000000e+00 : f32
    %17 = vector.broadcast %cst_11 : f32 to vector<8x64xf32>
    %18 = arith.maximumf %16, %17 : vector<8x64xf32>
    %c128 = arith.constant 128 : index
    %c0_12 = arith.constant 0 : index
    %19 = vector.load %arg2[%c128, %c0_12] : memref<408x64xf32, #tpu.memory_space<vmem>>, vector<64x64xf32>
    %cst_13 = arith.constant dense<0.000000e+00> : vector<8x64xf32>
    %20 = tpu.matmul %18, %19, %cst_13 {dimension_numbers = #tpu.dot_dimension_numbers<[1], [0], [0], [1], [0, 0, 1, 1], [], []>} : vector<8x64xf32>, vector<64x64xf32>, vector<8x64xf32> -> vector<8x64xf32>
    %c368 = arith.constant 368 : index
    %c0_14 = arith.constant 0 : index
    %21 = vector.load %arg2[%c368, %c0_14] : memref<408x64xf32, #tpu.memory_space<vmem>>, vector<1x64xf32>
    %22 = vector.broadcast %21 : vector<1x64xf32> to vector<8x64xf32>
    %23 = arith.addf %20, %22 : vector<8x64xf32>
    %24 = vector.extract_strided_slice %23 {offsets = [0, 0], sizes = [8, 16], strides = [1, 1]} : vector<8x64xf32> to vector<8x16xf32>
    %25 = vector.extract_strided_slice %23 {offsets = [0, 16], sizes = [8, 16], strides = [1, 1]} : vector<8x64xf32> to vector<8x16xf32>
    %cst_15 = arith.constant 5.000000e-01 : f32
    %26 = vector.broadcast %cst_15 : f32 to vector<8x16xf32>
    %27 = arith.mulf %26, %25 : vector<8x16xf32>
    %28 = math.exp %27 : vector<8x16xf32>
    %29 = arith.mulf %28, %4 : vector<8x16xf32>
    %30 = arith.addf %24, %29 : vector<8x16xf32>
    %c400 = arith.constant 400 : index
    %c0_16 = arith.constant 0 : index
    %31 = vector.load %arg2[%c400, %c0_16] : memref<408x64xf32, #tpu.memory_space<vmem>>, vector<2x64xf32>
    %32 = vector.extract_strided_slice %31 {offsets = [0, 0], sizes = [2, 16], strides = [1, 1]} : vector<2x64xf32> to vector<2x16xf32>
    %33 = vector.extract_strided_slice %31 {offsets = [0, 16], sizes = [2, 16], strides = [1, 1]} : vector<2x64xf32> to vector<2x16xf32>
    %34 = vector.extract_strided_slice %31 {offsets = [0, 32], sizes = [2, 1], strides = [1, 1]} : vector<2x64xf32> to vector<2x1xf32>
    %35 = arith.mulf %33, %32 : vector<2x16xf32>
    %cst_17 = arith.constant dense<0.000000e+00> : vector<2xf32>
    %36 = vector.multi_reduction <add>, %35, %cst_17 [1] : vector<2x16xf32> to vector<2xf32>
    %37 = vector.shape_cast %36 : vector<2xf32> to vector<2x1xf32>
    %38 = arith.mulf %33, %33 : vector<2x16xf32>
    %cst_18 = arith.constant dense<0.000000e+00> : vector<2xf32>
    %39 = vector.multi_reduction <add>, %38, %cst_18 [1] : vector<2x16xf32> to vector<2xf32>
    %40 = vector.shape_cast %39 : vector<2xf32> to vector<2x1xf32>
    %cst_19 = arith.constant 0.000000e+00 : f32
    %41 = vector.broadcast %cst_19 : f32 to vector<2x1xf32>
    %42 = arith.maximumf %37, %41 : vector<2x1xf32>
    %43 = vector.broadcast %cst_19 : f32 to vector<2x1xf32>
    %44 = arith.subf %37, %43 : vector<2x1xf32>
    %45 = arith.cmpf one, %44, %44 : vector<2x1xf32>
    %46 = vector.broadcast %cst_19 : f32 to vector<2x1xf32>
    %47 = arith.addf %37, %46 : vector<2x1xf32>
    %48 = math.absf %44 : vector<2x1xf32>
    %cst_20 = arith.constant 0.000000e+00 : f32
    %49 = vector.broadcast %cst_20 : f32 to vector<2x1xf32>
    %50 = arith.subf %49, %48 : vector<2x1xf32>
    %51 = math.exp %50 : vector<2x1xf32>
    %52 = math.log1p %51 : vector<2x1xf32>
    %53 = arith.addf %42, %52 : vector<2x1xf32>
    %54 = arith.select %45, %47, %53 : vector<2x1xi1>, vector<2x1xf32>
    %cst_21 = arith.constant 1.000000e+00 : f32
    %55 = vector.broadcast %cst_21 : f32 to vector<2x1xf32>
    %56 = arith.subf %54, %55 : vector<2x1xf32>
    %57 = arith.subf %56, %37 : vector<2x1xf32>
    %58 = arith.divf %57, %40 : vector<2x1xf32>
    %59 = vector.broadcast %58 : vector<2x1xf32> to vector<2x16xf32>
    %60 = arith.mulf %59, %33 : vector<2x16xf32>
    %61 = arith.addf %32, %60 : vector<2x16xf32>
    %62 = arith.mulf %33, %61 : vector<2x16xf32>
    %cst_22 = arith.constant dense<0.000000e+00> : vector<2xf32>
    %63 = vector.multi_reduction <add>, %62, %cst_22 [1] : vector<2x16xf32> to vector<2xf32>
    %64 = vector.shape_cast %63 : vector<2xf32> to vector<2x1xf32>
    %c336 = arith.constant 336 : index
    %c0_23 = arith.constant 0 : index
    %65 = vector.load %arg2[%c336, %c0_23] : memref<408x64xf32, #tpu.memory_space<vmem>>, vector<16x64xf32>
    %cst_24 = arith.constant 0.000000e+00 : f32
    %66 = vector.broadcast %cst_24 : f32 to vector<8x1xf32>
    %cst_25 = arith.constant dense<0.000000e+00> : vector<8x64xf32>
    %67 = tpu.matmul %30, %65, %cst_25 {dimension_numbers = #tpu.dot_dimension_numbers<[1], [0], [0], [1], [0, 0, 1, 1], [], []>} : vector<8x16xf32>, vector<16x64xf32>, vector<8x64xf32> -> vector<8x64xf32>
    %68 = vector.extract_strided_slice %67 {offsets = [0, 0], sizes = [8, 1], strides = [1, 1]} : vector<8x64xf32> to vector<8x1xf32>
    %69 = vector.extract_strided_slice %34 {offsets = [0, 0], sizes = [1, 1], strides = [1, 1]} : vector<2x1xf32> to vector<1x1xf32>
    %70 = vector.broadcast %69 : vector<1x1xf32> to vector<8x1xf32>
    %71 = arith.addf %68, %70 : vector<8x1xf32>
    %72 = math.tanh %71 : vector<8x1xf32>
    %73 = vector.extract_strided_slice %61 {offsets = [0, 0], sizes = [1, 16], strides = [1, 1]} : vector<2x16xf32> to vector<1x16xf32>
    %74 = vector.broadcast %73 : vector<1x16xf32> to vector<8x16xf32>
    %75 = vector.broadcast %72 : vector<8x1xf32> to vector<8x16xf32>
    %76 = arith.mulf %74, %75 : vector<8x16xf32>
    %77 = arith.addf %30, %76 : vector<8x16xf32>
    %78 = arith.mulf %72, %72 : vector<8x1xf32>
    %cst_26 = arith.constant 1.000000e+00 : f32
    %79 = vector.broadcast %cst_26 : f32 to vector<8x1xf32>
    %80 = arith.subf %79, %78 : vector<8x1xf32>
    %81 = vector.extract_strided_slice %64 {offsets = [0, 0], sizes = [1, 1], strides = [1, 1]} : vector<2x1xf32> to vector<1x1xf32>
    %82 = vector.broadcast %81 : vector<1x1xf32> to vector<8x1xf32>
    %83 = arith.mulf %80, %82 : vector<8x1xf32>
    %cst_27 = arith.constant 1.000000e+00 : f32
    %84 = vector.broadcast %cst_27 : f32 to vector<8x1xf32>
    %85 = arith.addf %84, %83 : vector<8x1xf32>
    %86 = math.absf %85 : vector<8x1xf32>
    %cst_28 = arith.constant 9.99999993E-9 : f32
    %87 = vector.broadcast %cst_28 : f32 to vector<8x1xf32>
    %88 = arith.addf %86, %87 : vector<8x1xf32>
    %89 = math.log %88 : vector<8x1xf32>
    %90 = arith.addf %66, %89 : vector<8x1xf32>
    %cst_29 = arith.constant dense<0.000000e+00> : vector<8x64xf32>
    %91 = tpu.matmul %77, %65, %cst_29 {dimension_numbers = #tpu.dot_dimension_numbers<[1], [0], [0], [1], [0, 0, 1, 1], [], []>} : vector<8x16xf32>, vector<16x64xf32>, vector<8x64xf32> -> vector<8x64xf32>
    %92 = vector.extract_strided_slice %91 {offsets = [0, 1], sizes = [8, 1], strides = [1, 1]} : vector<8x64xf32> to vector<8x1xf32>
    %93 = vector.extract_strided_slice %34 {offsets = [1, 0], sizes = [1, 1], strides = [1, 1]} : vector<2x1xf32> to vector<1x1xf32>
    %94 = vector.broadcast %93 : vector<1x1xf32> to vector<8x1xf32>
    %95 = arith.addf %92, %94 : vector<8x1xf32>
    %96 = math.tanh %95 : vector<8x1xf32>
    %97 = vector.extract_strided_slice %61 {offsets = [1, 0], sizes = [1, 16], strides = [1, 1]} : vector<2x16xf32> to vector<1x16xf32>
    %98 = vector.broadcast %97 : vector<1x16xf32> to vector<8x16xf32>
    %99 = vector.broadcast %96 : vector<8x1xf32> to vector<8x16xf32>
    %100 = arith.mulf %98, %99 : vector<8x16xf32>
    %101 = arith.addf %77, %100 : vector<8x16xf32>
    %102 = arith.mulf %96, %96 : vector<8x1xf32>
    %cst_30 = arith.constant 1.000000e+00 : f32
    %103 = vector.broadcast %cst_30 : f32 to vector<8x1xf32>
    %104 = arith.subf %103, %102 : vector<8x1xf32>
    %105 = vector.extract_strided_slice %64 {offsets = [1, 0], sizes = [1, 1], strides = [1, 1]} : vector<2x1xf32> to vector<1x1xf32>
    %106 = vector.broadcast %105 : vector<1x1xf32> to vector<8x1xf32>
    %107 = arith.mulf %104, %106 : vector<8x1xf32>
    %cst_31 = arith.constant 1.000000e+00 : f32
    %108 = vector.broadcast %cst_31 : f32 to vector<8x1xf32>
    %109 = arith.addf %108, %107 : vector<8x1xf32>
    %110 = math.absf %109 : vector<8x1xf32>
    %cst_32 = arith.constant 9.99999993E-9 : f32
    %111 = vector.broadcast %cst_32 : f32 to vector<8x1xf32>
    %112 = arith.addf %110, %111 : vector<8x1xf32>
    %113 = math.log %112 : vector<8x1xf32>
    %114 = arith.addf %90, %113 : vector<8x1xf32>
    %cst_33 = arith.constant 9.99999993E-9 : f32
    %115 = vector.broadcast %cst_33 : f32 to vector<8x16xf32>
    %116 = arith.addf %25, %115 : vector<8x16xf32>
    %cst_34 = arith.constant 5.000000e-01 : f32
    %117 = vector.broadcast %cst_34 : f32 to vector<8x16xf32>
    %118 = arith.mulf %117, %116 : vector<8x16xf32>
    %cst_35 = arith.constant -0.918938517 : f32
    %119 = vector.broadcast %cst_35 : f32 to vector<8x16xf32>
    %120 = arith.subf %119, %118 : vector<8x16xf32>
    %121 = arith.mulf %4, %4 : vector<8x16xf32>
    %cst_36 = arith.constant 5.000000e-01 : f32
    %122 = vector.broadcast %cst_36 : f32 to vector<8x16xf32>
    %123 = arith.mulf %122, %121 : vector<8x16xf32>
    %124 = arith.subf %120, %123 : vector<8x16xf32>
    %cst_37 = arith.constant dense<0.000000e+00> : vector<8xf32>
    %125 = vector.multi_reduction <add>, %124, %cst_37 [1] : vector<8x16xf32> to vector<8xf32>
    %126 = vector.shape_cast %125 : vector<8xf32> to vector<8x1xf32>
    %127 = arith.subf %126, %114 : vector<8x1xf32>
    %128 = arith.mulf %101, %101 : vector<8x16xf32>
    %cst_38 = arith.constant 9.99999993E-9 : f32
    %129 = vector.broadcast %cst_38 : f32 to vector<8x16xf32>
    %130 = arith.addf %128, %129 : vector<8x16xf32>
    %cst_39 = arith.constant 5.000000e-01 : f32
    %131 = vector.broadcast %cst_39 : f32 to vector<8x16xf32>
    %132 = arith.mulf %131, %130 : vector<8x16xf32>
    %cst_40 = arith.constant -0.918938517 : f32
    %133 = vector.broadcast %cst_40 : f32 to vector<8x16xf32>
    %134 = arith.subf %133, %132 : vector<8x16xf32>
    %cst_41 = arith.constant dense<0.000000e+00> : vector<8xf32>
    %135 = vector.multi_reduction <add>, %134, %cst_41 [1] : vector<8x16xf32> to vector<8xf32>
    %136 = vector.shape_cast %135 : vector<8xf32> to vector<8x1xf32>
    %c192 = arith.constant 192 : index
    %c0_42 = arith.constant 0 : index
    %137 = vector.load %arg2[%c192, %c0_42] : memref<408x64xf32, #tpu.memory_space<vmem>>, vector<16x64xf32>
    %cst_43 = arith.constant dense<0.000000e+00> : vector<8x64xf32>
    %138 = tpu.matmul %101, %137, %cst_43 {dimension_numbers = #tpu.dot_dimension_numbers<[1], [0], [0], [1], [0, 0, 1, 1], [], []>} : vector<8x16xf32>, vector<16x64xf32>, vector<8x64xf32> -> vector<8x64xf32>
    %c376 = arith.constant 376 : index
    %c0_44 = arith.constant 0 : index
    %139 = vector.load %arg2[%c376, %c0_44] : memref<408x64xf32, #tpu.memory_space<vmem>>, vector<1x64xf32>
    %140 = vector.broadcast %139 : vector<1x64xf32> to vector<8x64xf32>
    %141 = arith.addf %138, %140 : vector<8x64xf32>
    %cst_45 = arith.constant 0.000000e+00 : f32
    %142 = vector.broadcast %cst_45 : f32 to vector<8x64xf32>
    %143 = arith.maximumf %141, %142 : vector<8x64xf32>
    %c208 = arith.constant 208 : index
    %c0_46 = arith.constant 0 : index
    %144 = vector.load %arg2[%c208, %c0_46] : memref<408x64xf32, #tpu.memory_space<vmem>>, vector<64x64xf32>
    %cst_47 = arith.constant dense<0.000000e+00> : vector<8x64xf32>
    %145 = tpu.matmul %143, %144, %cst_47 {dimension_numbers = #tpu.dot_dimension_numbers<[1], [0], [0], [1], [0, 0, 1, 1], [], []>} : vector<8x64xf32>, vector<64x64xf32>, vector<8x64xf32> -> vector<8x64xf32>
    %c384 = arith.constant 384 : index
    %c0_48 = arith.constant 0 : index
    %146 = vector.load %arg2[%c384, %c0_48] : memref<408x64xf32, #tpu.memory_space<vmem>>, vector<1x64xf32>
    %147 = vector.broadcast %146 : vector<1x64xf32> to vector<8x64xf32>
    %148 = arith.addf %145, %147 : vector<8x64xf32>
    %cst_49 = arith.constant 0.000000e+00 : f32
    %149 = vector.broadcast %cst_49 : f32 to vector<8x64xf32>
    %150 = arith.maximumf %148, %149 : vector<8x64xf32>
    %c272 = arith.constant 272 : index
    %c0_50 = arith.constant 0 : index
    %151 = vector.load %arg2[%c272, %c0_50] : memref<408x64xf32, #tpu.memory_space<vmem>>, vector<64x64xf32>
    %cst_51 = arith.constant dense<0.000000e+00> : vector<8x64xf32>
    %152 = tpu.matmul %150, %151, %cst_51 {dimension_numbers = #tpu.dot_dimension_numbers<[1], [0], [0], [1], [0, 0, 1, 1], [], []>} : vector<8x64xf32>, vector<64x64xf32>, vector<8x64xf32> -> vector<8x64xf32>
    %c392 = arith.constant 392 : index
    %c0_52 = arith.constant 0 : index
    %153 = vector.load %arg2[%c392, %c0_52] : memref<408x64xf32, #tpu.memory_space<vmem>>, vector<1x64xf32>
    %154 = vector.broadcast %153 : vector<1x64xf32> to vector<8x64xf32>
    %155 = arith.addf %152, %154 : vector<8x64xf32>
    %156 = arith.negf %155 : vector<8x64xf32>
    %157 = math.exp %156 : vector<8x64xf32>
    %cst_53 = arith.constant 1.000000e+00 : f32
    %158 = vector.broadcast %cst_53 : f32 to vector<8x64xf32>
    %159 = arith.addf %158, %157 : vector<8x64xf32>
    %160 = arith.divf %158, %159 : vector<8x64xf32>
    %cst_54 = arith.constant 0.000000e+00 : f32
    %161 = vector.broadcast %cst_54 : f32 to vector<8x62xf32>
    %162 = tpu.concatenate %160, %127, %136, %161 in 1 : vector<8x64xf32>, vector<8x1xf32>, vector<8x1xf32>, vector<8x62xf32> -> vector<8x128xf32>
    %c0_55 = arith.constant 0 : index
    %c0_56 = arith.constant 0 : index
    %163 = vector.load %arg3[%c0_55, %c0_56] : memref<8x128xf32, #tpu.memory_space<vmem>>, vector<8x128xf32>
    tpu.vector_store %arg3[%c0_55, %c0_56], %162 {strides = array<i32>} : memref<8x128xf32, #tpu.memory_space<vmem>>, vector<8x128xf32>,
    return
  }
  func.func @transform_0(%arg0: i32) -> (i32, i32, i32) {
    %c0_i32 = arith.constant 0 : i32
    %c0_i32_0 = arith.constant 0 : i32
    %c0_i32_1 = arith.constant 0 : i32
    return %c0_i32, %arg0, %c0_i32_0 : i32, i32, i32
  }
  func.func @transform_1(%arg0: i32) -> (i32, i32) {
    %c0_i32 = arith.constant 0 : i32
    %c0_i32_0 = arith.constant 0 : i32
    %c0_i32_1 = arith.constant 0 : i32
    return %c0_i32, %c0_i32_0 : i32, i32
  }
  func.func @transform_2(%arg0: i32) -> (i32, i32) {
    %c0_i32 = arith.constant 0 : i32
    %c0_i32_0 = arith.constant 0 : i32
    return %arg0, %c0_i32 : i32, i32
  }
}

</mosaic_0001>

<llo_original>
// kernel: vae_flows_forward.1
$region0: #{vae_flows_forward.1}
  #allocation0 [shape = 'u32[]', space=smem, size = 0x4, offset = 0x4, fixed_abs, tag = 'smem constant byte address 0x4 - core index']
  #allocation1 [shape = 'u32[144,128]{1,0:T(1,128)}', space=vmem, size = 0x12000, scoped, tag = 'internal scratch']
  %s0 = inlined_call_operand.vmem [shape: f32[2,8,64], index: 0, kind: input, shape index: {}]
  %s1 = inlined_call_operand.vmem [shape: f32[408,64], index: 1, kind: input, shape index: {}]
  %s2 = inlined_call_operand.vmem [shape: f32[8,128], index: 2, kind: output, shape index: {}]
  %s3 = sld [smem:[#allocation0]]
  $region18: #{vae_flows_forward.1} parent=0
    _
  %s5 = ssub.s32 1, %s3
  %s6 = scalar_select 0, %s5, %s3
  // Predicated region
  $region2: #{vae_flows_forward.1} parent=0 // pred_check
    _
  $region3: #{vae_flows_forward.1} parent=0 // pred_check_branch
    %8 = sbr.rel (0) target = $region5
  $region4: #{vae_flows_forward.1} parent=0 // pred_region
    _
  $region5: #{vae_flows_forward.1} parent=0 // pred_fallthru
    _
  // Predicated region
  $region6: #{vae_flows_forward.1} parent=0 // pred_check
    _
  $region7: #{vae_flows_forward.1} parent=0 // pred_check_branch
    %10 = sbr.rel (0) target = $region9
  $region8: #{vae_flows_forward.1} parent=0 // pred_region
    _
  $region9: #{vae_flows_forward.1} parent=0 // pred_fallthru
    _
  %v11 = vld [vmem:[%s0] sm:$0xff]
  %s12 = scalar_lea.vmem %s0, 8
  %v13 = vld [vmem:[%s12] sm:$0xff]
  %v14 = vld [vmem:[%s1] sm:$0xff]
  %v15 = vld [vmem:[%s1 + $0x8] sm:$0xff]
  %v16 = vld [vmem:[%s1 + $0x10] sm:$0xff]
  %v17 = vld [vmem:[%s1 + $0x18] sm:$0xff]
  %v18 = vld [vmem:[%s1 + $0x20] sm:$0xff]
  %v19 = vld [vmem:[%s1 + $0x28] sm:$0xff]
  %v20 = vld [vmem:[%s1 + $0x30] sm:$0xff]
  %v21 = vld [vmem:[%s1 + $0x38] sm:$0xff]
  %v22 = vld [vmem:[%s1 + $0x160] sm:$0x1]
  %v23 = vlaneseq
  %v24 = vshrl.u32 %v23, 7
  %v25 = vsub.s32 0, %v24
  %v26 = vrot.slane %v22, %v25
  %vm27 = vcmask 523264
  %v29 = vsel %vm27, %v11, 0
  %31 = vmatprep.subr.mxu0 0.0
  %32 = vmatpush1.msra.mxu0 %v14
  %33 = vmatprep.subr.mxu0 0.0
  %34 = vmatpush1.msra.mxu0 %v15
  %35 = vmatprep.subr.mxu0 0.0
  %36 = vmatpush1.msra.mxu0 %v16
  %37 = vmatprep.subr.mxu0 0.0
  %38 = vmatpush1.msra.mxu0 %v17
  %39 = vmatprep.subr.mxu0 0.0
  %40 = vmatpush1.msra.mxu0 %v18
  %41 = vmatprep.subr.mxu0 0.0
  %42 = vmatpush1.msra.mxu0 %v19
  %43 = vmatprep.subr.mxu0 0.0
  %44 = vmatpush1.msra.mxu0 %v20
  %45 = vmatprep.subr.mxu0 0.0
  %46 = vmatpush1.msra.mxu0 %v21
  %47 = vmatprep.subr.mxu0 0.0
  %48 = vmatpush1.msra.mxu0 0.0
  %49 = vmatprep.subr.mxu0 0.0
  %50 = vmatpush1.msra.mxu0 0.0
  %51 = vmatprep.subr.mxu0 0.0
  %52 = vmatpush1.msra.mxu0 0.0
  %53 = vmatprep.subr.mxu0 0.0
  %54 = vmatpush1.msra.mxu0 0.0
  %55 = vmatprep.subr.mxu0 0.0
  %56 = vmatpush1.msra.mxu0 0.0
  %57 = vmatprep.subr.mxu0 0.0
  %58 = vmatpush1.msra.mxu0 0.0
  %59 = vmatprep.subr.mxu0 0.0
  %60 = vmatpush1.msra.mxu0 0.0
  %61 = vmatprep.subr.mxu0 0.0
  %62 = vmatpush1.msra.mxu0 0.0
  %63 = vmatprep.subr.mxu0 0.0
  %64 = vmatpush1.msra.mxu0 0.0
  %65 = vmatprep.subr.mxu0 0.0
  %66 = vmatpush1.msra.mxu0 0.0
  %67 = vmatprep.subr.mxu0 0.0
  %68 = vmatpush1.msra.mxu0 0.0
  %69 = vmatprep.subr.mxu0 0.0
  %70 = vmatpush1.msra.mxu0 0.0
  %71 = vmatprep.subr.mxu0 0.0
  %72 = vmatpush1.msra.mxu0 0.0
  %73 = vmatprep.subr.mxu0 0.0
  %74 = vmatpush1.msra.mxu0 0.0
  %75 = vmatprep.subr.mxu0 0.0
  %76 = vmatpush1.msra.mxu0 0.0
  %77 = vmatprep.subr.mxu0 0.0
  %78 = vmatpush1.msra.mxu0 0.0
  %79 = vmatprep.subr.mxu0 0.0
  %80 = vmatpush1.msra.mxu0 0.0
  %81 = vmatprep.subr.mxu0 0.0
  %82 = vmatpush1.msra.mxu0 0.0
  %83 = vmatprep.subr.mxu0 0.0
  %84 = vmatpush1.msra.mxu0 0.0
  %85 = vmatprep.subr.mxu0 0.0
  %86 = vmatpush1.msra.mxu0 0.0
  %87 = vmatprep.subr.mxu0 0.0
  %88 = vmatpush1.msra.mxu0 0.0
  %89 = vmatprep.subr.mxu0 0.0
  %90 = vmatpush1.msra.mxu0 0.0
  %91 = vmatprep.subr.mxu0 0.0
  %92 = vmatpush1.msra.mxu0 0.0
  %93 = vmatprep.subr.mxu0 0.0
  %94 = vmatpush1.msra.mxu0 0.0
  %95 = vmatprep.mubr.f32.mxu0 0.0
  %96 = vmatmul.mubr.f32.gmra.mrb[0].mxu0 %v29
  %v97 = vpop.f32.mrb[0].mxu0
  %v98 = vadd.f32 %v26, %v97
  %v99 = vpop.f32.mrb[0].mxu0
  %100 = vdwg.mxu0
  %v101 = vmax.f32 %v98, 0.0
  %v102 = vld [vmem:[%s1 + $0x40] sm:$0xff]
  %v103 = vld [vmem:[%s1 + $0x48] sm:$0xff]
  %v104 = vld [vmem:[%s1 + $0x50] sm:$0xff]
  %v105 = vld [vmem:[%s1 + $0x58] sm:$0xff]
  %v106 = vld [vmem:[%s1 + $0x60] sm:$0xff]
  %v107 = vld [vmem:[%s1 + $0x68] sm:$0xff]
  %v108 = vld [vmem:[%s1 + $0x70] sm:$0xff]
  %v109 = vld [vmem:[%s1 + $0x78] sm:$0xff]
  %v110 = vld [vmem:[%s1 + $0x168] sm:$0x1]
  %v111 = vlaneseq
  %v112 = vshrl.u32 %v111, 7
  %v113 = vsub.s32 0, %v112
  %v114 = vrot.slane %v110, %v113
  %v116 = vsel %vm27, %v101, 0
  %118 = vmatprep.subr.mxu0 0.0
  %119 = vmatpush1.msra.mxu0 %v102
  %120 = vmatprep.subr.mxu0 0.0
  %121 = vmatpush1.msra.mxu0 %v103
  %122 = vmatprep.subr.mxu0 0.0
  %123 = vmatpush1.msra.mxu0 %v104
  %124 = vmatprep.subr.mxu0 0.0
  %125 = vmatpush1.msra.mxu0 %v105
  %126 = vmatprep.subr.mxu0 0.0
  %127 = vmatpush1.msra.mxu0 %v106
  %128 = vmatprep.subr.mxu0 0.0
  %129 = vmatpush1.msra.mxu0 %v107
  %130 = vmatprep.subr.mxu0 0.0
  %131 = vmatpush1.msra.mxu0 %v108
  %132 = vmatprep.subr.mxu0 0.0
  %133 = vmatpush1.msra.mxu0 %v109
  %134 = vmatprep.subr.mxu0 0.0
  %135 = vmatpush1.msra.mxu0 0.0
  %136 = vmatprep.subr.mxu0 0.0
  %137 = vmatpush1.msra.mxu0 0.0
  %138 = vmatprep.subr.mxu0 0.0
  %139 = vmatpush1.msra.mxu0 0.0
  %140 = vmatprep.subr.mxu0 0.0
  %141 = vmatpush1.msra.mxu0 0.0
  %142 = vmatprep.subr.mxu0 0.0
  %143 = vmatpush1.msra.mxu0 0.0
  %144 = vmatprep.subr.mxu0 0.0
  %145 = vmatpush1.msra.mxu0 0.0
  %146 = vmatprep.subr.mxu0 0.0
  %147 = vmatpush1.msra.mxu0 0.0
  %148 = vmatprep.subr.mxu0 0.0
  %149 = vmatpush1.msra.mxu0 0.0
  %150 = vmatprep.subr.mxu0 0.0
  %151 = vmatpush1.msra.mxu0 0.0
  %152 = vmatprep.subr.mxu0 0.0
  %153 = vmatpush1.msra.mxu0 0.0
  %154 = vmatprep.subr.mxu0 0.0
  %155 = vmatpush1.msra.mxu0 0.0
  %156 = vmatprep.subr.mxu0 0.0
  %157 = vmatpush1.msra.mxu0 0.0
  %158 = vmatprep.subr.mxu0 0.0
  %159 = vmatpush1.msra.mxu0 0.0
  %160 = vmatprep.subr.mxu0 0.0
  %161 = vmatpush1.msra.mxu0 0.0
  %162 = vmatprep.subr.mxu0 0.0
  %163 = vmatpush1.msra.mxu0 0.0
  %164 = vmatprep.subr.mxu0 0.0
  %165 = vmatpush1.msra.mxu0 0.0
  %166 = vmatprep.subr.mxu0 0.0
  %167 = vmatpush1.msra.mxu0 0.0
  %168 = vmatprep.subr.mxu0 0.0
  %169 = vmatpush1.msra.mxu0 0.0
  %170 = vmatprep.subr.mxu0 0.0
  %171 = vmatpush1.msra.mxu0 0.0
  %172 = vmatprep.subr.mxu0 0.0
  %173 = vmatpush1.msra.mxu0 0.0
  %174 = vmatprep.subr.mxu0 0.0
  %175 = vmatpush1.msra.mxu0 0.0
  %176 = vmatprep.subr.mxu0 0.0
  %177 = vmatpush1.msra.mxu0 0.0
  %178 = vmatprep.subr.mxu0 0.0
  %179 = vmatpush1.msra.mxu0 0.0
  %180 = vmatprep.subr.mxu0 0.0
  %181 = vmatpush1.msra.mxu0 0.0
  %182 = vmatprep.mubr.f32.mxu0 0.0
  %183 = vmatmul.mubr.f32.gmra.mrb[0].mxu0 %v116
  %v184 = vpop.f32.mrb[0].mxu0
  %v185 = vadd.f32 %v114, %v184
  %v186 = vpop.f32.mrb[0].mxu0
  %187 = vdwg.mxu0
  %v188 = vmax.f32 %v185, 0.0
  %v189 = vld [vmem:[%s1 + $0x80] sm:$0xff]
  %v190 = vld [vmem:[%s1 + $0x88] sm:$0xff]
  %v191 = vld [vmem:[%s1 + $0x90] sm:$0xff]
  %v192 = vld [vmem:[%s1 + $0x98] sm:$0xff]
  %v193 = vld [vmem:[%s1 + $0xa0] sm:$0xff]
  %v194 = vld [vmem:[%s1 + $0xa8] sm:$0xff]
  %v195 = vld [vmem:[%s1 + $0xb0] sm:$0xff]
  %v196 = vld [vmem:[%s1 + $0xb8] sm:$0xff]
  %v197 = vld [vmem:[%s1 + $0x170] sm:$0x1]
  %v198 = vlaneseq
  %v199 = vshrl.u32 %v198, 7
  %v200 = vsub.s32 0, %v199
  %v201 = vrot.slane %v197, %v200
  %v203 = vsel %vm27, %v188, 0
  %205 = vmatprep.subr.mxu0 0.0
  %206 = vmatpush1.msra.mxu0 %v189
  %207 = vmatprep.subr.mxu0 0.0
  %208 = vmatpush1.msra.mxu0 %v190
  %209 = vmatprep.subr.mxu0 0.0
  %210 = vmatpush1.msra.mxu0 %v191
  %211 = vmatprep.subr.mxu0 0.0
  %212 = vmatpush1.msra.mxu0 %v192
  %213 = vmatprep.subr.mxu0 0.0
  %214 = vmatpush1.msra.mxu0 %v193
  %215 = vmatprep.subr.mxu0 0.0
  %216 = vmatpush1.msra.mxu0 %v194
  %217 = vmatprep.subr.mxu0 0.0
  %218 = vmatpush1.msra.mxu0 %v195
  %219 = vmatprep.subr.mxu0 0.0
  %220 = vmatpush1.msra.mxu0 %v196
  %221 = vmatprep.subr.mxu0 0.0
  %222 = vmatpush1.msra.mxu0 0.0
  %223 = vmatprep.subr.mxu0 0.0
  %224 = vmatpush1.msra.mxu0 0.0
  %225 = vmatprep.subr.mxu0 0.0
  %226 = vmatpush1.msra.mxu0 0.0
  %227 = vmatprep.subr.mxu0 0.0
  %228 = vmatpush1.msra.mxu0 0.0
  %229 = vmatprep.subr.mxu0 0.0
  %230 = vmatpush1.msra.mxu0 0.0
  %231 = vmatprep.subr.mxu0 0.0
  %232 = vmatpush1.msra.mxu0 0.0
  %233 = vmatprep.subr.mxu0 0.0
  %234 = vmatpush1.msra.mxu0 0.0
  %235 = vmatprep.subr.mxu0 0.0
  %236 = vmatpush1.msra.mxu0 0.0
  %237 = vmatprep.subr.mxu0 0.0
  %238 = vmatpush1.msra.mxu0 0.0
  %239 = vmatprep.subr.mxu0 0.0
  %240 = vmatpush1.msra.mxu0 0.0
  %241 = vmatprep.subr.mxu0 0.0
  %242 = vmatpush1.msra.mxu0 0.0
  %243 = vmatprep.subr.mxu0 0.0
  %244 = vmatpush1.msra.mxu0 0.0
  %245 = vmatprep.subr.mxu0 0.0
  %246 = vmatpush1.msra.mxu0 0.0
  %247 = vmatprep.subr.mxu0 0.0
  %248 = vmatpush1.msra.mxu0 0.0
  %249 = vmatprep.subr.mxu0 0.0
  %250 = vmatpush1.msra.mxu0 0.0
  %251 = vmatprep.subr.mxu0 0.0
  %252 = vmatpush1.msra.mxu0 0.0
  %253 = vmatprep.subr.mxu0 0.0
  %254 = vmatpush1.msra.mxu0 0.0
  %255 = vmatprep.subr.mxu0 0.0
  %256 = vmatpush1.msra.mxu0 0.0
  %257 = vmatprep.subr.mxu0 0.0
  %258 = vmatpush1.msra.mxu0 0.0
  %259 = vmatprep.subr.mxu0 0.0
  %260 = vmatpush1.msra.mxu0 0.0
  %261 = vmatprep.subr.mxu0 0.0
  %262 = vmatpush1.msra.mxu0 0.0
  %263 = vmatprep.subr.mxu0 0.0
  %264 = vmatpush1.msra.mxu0 0.0
  %265 = vmatprep.subr.mxu0 0.0
  %266 = vmatpush1.msra.mxu0 0.0
  %267 = vmatprep.subr.mxu0 0.0
  %268 = vmatpush1.msra.mxu0 0.0
  %269 = vmatprep.mubr.f32.mxu0 0.0
  %270 = vmatmul.mubr.f32.gmra.mrb[0].mxu0 %v203
  %v271 = vpop.f32.mrb[0].mxu0
  %v272 = vadd.f32 %v201, %v271
  %v273 = vpop.f32.mrb[0].mxu0
  %274 = vdwg.mxu0
  %v275 = vmul.f32 %v272, 0.5
  %v276 = vmul.f32 %v275, 1.442695
  %v277 = vpow.pop %v276
  %279 = vrot.lane.b32.xlu0 %v13, 16
  %v280 = vpop.permute.xlu0 %279
  %v282 = vmul.f32 %v277, %v280
  %284 = vrot.lane.b32.xlu0 %v282, 112
  %v285 = vpop.permute.xlu0 %284
  %v287 = vadd.f32 %v272, %v285
  %v288 = vld [vmem:[%s1 + $0x190] sm:$0x3]
  %290 = vrot.lane.b32.xlu0 %v288, 16
  %v291 = vpop.permute.xlu0 %290
  %v293 = vmul.f32 %v288, %v291
  %295 = vrot.lane.b32.xlu0 %v293, 112
  %v296 = vpop.permute.xlu0 %295
  %vm298 = vcmask 123904
  %v299 = vsel %vm298, %v296, 0.0
  %300 = vadd.xlane.f32.xlu0 %v299
  %v301 = vpop.xlane.xlu0 %300
  %v302 = vmul.f32 %v288, %v288
  %304 = vrot.lane.b32.xlu0 %v302, 112
  %v305 = vpop.permute.xlu0 %304
  %v307 = vsel %vm298, %v305, 0.0
  %308 = vadd.xlane.f32.xlu0 %v307
  %v309 = vpop.xlane.xlu0 %308
  %v310 = vmax.f32 %v301, 0.0
  %vm311 = vcmp.ne.f32.partialorder %v301, %v301
  %v312 = vadd.f32 %v301, 0.0
  %v313 = vand.u32 2147483647, %v301
  %v314 = vsub.f32 0.0, %v313
  %v315 = vmul.f32 %v314, 1.442695
  %v316 = vpow.pop %v315
  %v317 = vadd.f32 %v316, 1.0
  %v318 = vlog2.pop %v317
  %v319 = vmul.f32 %v318, 0.6931472
  %v320 = vmul.f32 -0.5, %v316
  %v321 = vadd.f32 %v320, 1.0
  %v322 = vmul.f32 %v321, %v316
  %v323 = vand.u32 2147483647, %v316
  %vm324 = vcmp.lt.f32.partialorder %v323, 0.0004427343
  %v325 = vsel %vm324, %v322, %v319
  %v326 = vadd.f32 %v310, %v325
  %v327 = vsel %vm311, %v312, %v326
  %v328 = vsub.f32 %v327, 1.0
  %v329 = vsub.f32 %v328, %v301
  %v330 = vrcp.pop %v309
  %v331 = vmul.f32 %v329, %v330
  %v332 = vmul.f32 %v331, %v288
  %334 = vrot.lane.b32.xlu0 %v332, 112
  %v335 = vpop.permute.xlu0 %334
  %v337 = vadd.f32 %v288, %v335
  %339 = vrot.lane.b32.xlu0 %v337, 16
  %v340 = vpop.permute.xlu0 %339
  %v342 = vmul.f32 %v288, %v340
  %344 = vrot.lane.b32.xlu0 %v342, 112
  %v345 = vpop.permute.xlu0 %344
  %v347 = vsel %vm298, %v345, 0.0
  %348 = vadd.xlane.f32.xlu0 %v347
  %v349 = vpop.xlane.xlu0 %348
  %v350 = vld [vmem:[%s1 + $0x150] sm:$0xff]
  %v351 = vld [vmem:[%s1 + $0x158] sm:$0xff]
  %vm352 = vcmask 130048
  %v354 = vsel %vm352, %v287, 0
  %356 = vmatprep.subr.mxu0 0.0
  %357 = vmatpush1.msra.mxu0 %v350
  %358 = vmatprep.subr.mxu0 0.0
  %359 = vmatpush1.msra.mxu0 %v351
  %360 = vmatprep.subr.mxu0 0.0
  %361 = vmatpush1.msra.mxu0 0.0
  %362 = vmatprep.subr.mxu0 0.0
  %363 = vmatpush1.msra.mxu0 0.0
  %364 = vmatprep.subr.mxu0 0.0
  %365 = vmatpush1.msra.mxu0 0.0
  %366 = vmatprep.subr.mxu0 0.0
  %367 = vmatpush1.msra.mxu0 0.0
  %368 = vmatprep.subr.mxu0 0.0
  %369 = vmatpush1.msra.mxu0 0.0
  %370 = vmatprep.subr.mxu0 0.0
  %371 = vmatpush1.msra.mxu0 0.0
  %372 = vmatprep.subr.mxu0 0.0
  %373 = vmatpush1.msra.mxu0 0.0
  %374 = vmatprep.subr.mxu0 0.0
  %375 = vmatpush1.msra.mxu0 0.0
  %376 = vmatprep.subr.mxu0 0.0
  %377 = vmatpush1.msra.mxu0 0.0
  %378 = vmatprep.subr.mxu0 0.0
  %379 = vmatpush1.msra.mxu0 0.0
  %380 = vmatprep.subr.mxu0 0.0
  %381 = vmatpush1.msra.mxu0 0.0
  %382 = vmatprep.subr.mxu0 0.0
  %383 = vmatpush1.msra.mxu0 0.0
  %384 = vmatprep.subr.mxu0 0.0
  %385 = vmatpush1.msra.mxu0 0.0
  %386 = vmatprep.subr.mxu0 0.0
  %387 = vmatpush1.msra.mxu0 0.0
  %388 = vmatprep.subr.mxu0 0.0
  %389 = vmatpush1.msra.mxu0 0.0
  %390 = vmatprep.subr.mxu0 0.0
  %391 = vmatpush1.msra.mxu0 0.0
  %392 = vmatprep.subr.mxu0 0.0
  %393 = vmatpush1.msra.mxu0 0.0
  %394 = vmatprep.subr.mxu0 0.0
  %395 = vmatpush1.msra.mxu0 0.0
  %396 = vmatprep.subr.mxu0 0.0
  %397 = vmatpush1.msra.mxu0 0.0
  %398 = vmatprep.subr.mxu0 0.0
  %399 = vmatpush1.msra.mxu0 0.0
  %400 = vmatprep.subr.mxu0 0.0
  %401 = vmatpush1.msra.mxu0 0.0
  %402 = vmatprep.subr.mxu0 0.0
  %403 = vmatpush1.msra.mxu0 0.0
  %404 = vmatprep.subr.mxu0 0.0
  %405 = vmatpush1.msra.mxu0 0.0
  %406 = vmatprep.subr.mxu0 0.0
  %407 = vmatpush1.msra.mxu0 0.0
  %408 = vmatprep.subr.mxu0 0.0
  %409 = vmatpush1.msra.mxu0 0.0
  %410 = vmatprep.subr.mxu0 0.0
  %411 = vmatpush1.msra.mxu0 0.0
  %412 = vmatprep.subr.mxu0 0.0
  %413 = vmatpush1.msra.mxu0 0.0
  %414 = vmatprep.subr.mxu0 0.0
  %415 = vmatpush1.msra.mxu0 0.0
  %416 = vmatprep.subr.mxu0 0.0
  %417 = vmatpush1.msra.mxu0 0.0
  %418 = vmatprep.subr.mxu0 0.0
  %419 = vmatpush1.msra.mxu0 0.0
  %420 = vmatprep.mubr.f32.mxu0 0.0
  %421 = vmatmul.mubr.f32.gmra.mrb[0].mxu0 %v354
  %v422 = vpop.f32.mrb[0].mxu0
  %v423 = vadd.f32 0.0, %v422
  %v424 = vpop.f32.mrb[0].mxu0
  %425 = vdwg.mxu0
  %v426 = vlaneseq
  %v427 = vshrl.u32 %v426, 7
  %v428 = vsub.s32 0, %v427
  %v429 = vrot.slane %v288, %v428
  %431 = vrot.lane.b32.xlu0 %v429, 96
  %v432 = vpop.permute.xlu0 %431
  %v434 = vadd.f32 %v423, %v432
  %v435 = vtanh.pop %v434
  %v436 = vlaneseq
  %v437 = vshrl.u32 %v436, 7
  %v438 = vsub.s32 0, %v437
  %v439 = vrot.slane %v337, %v438
  %441 = vset.pattern.permute.xlu0 0
  %442 = vperm.xlu0 %441, %v435
  %v443 = vpop.permute.xlu0 %442
  %v445 = vmul.f32 %v439, %v443
  %v446 = vadd.f32 %v287, %v445
  %v447 = vmul.f32 %v435, %v435
  %v448 = vsub.f32 1.0, %v447
  %v449 = vlaneseq
  %v450 = vshrl.u32 %v449, 7
  %v451 = vsub.s32 0, %v450
  %v452 = vrot.slane %v349, %v451
  %v453 = vmul.f32 %v448, %v452
  %v454 = vadd.f32 %v453, 1.0
  %v455 = vand.u32 2147483647, %v454
  %v456 = vadd.f32 %v455, 1e-08
  %v457 = vlog2.pop %v456
  %v458 = vmul.f32 %v457, 0.6931472
  %v459 = vadd.f32 %v458, 0.0
  %v461 = vsel %vm352, %v446, 0
  %463 = vmatprep.subr.mxu0 0.0
  %464 = vmatpush1.msra.mxu0 %v350
  %465 = vmatprep.subr.mxu0 0.0
  %466 = vmatpush1.msra.mxu0 %v351
  %467 = vmatprep.subr.mxu0 0.0
  %468 = vmatpush1.msra.mxu0 0.0
  %469 = vmatprep.subr.mxu0 0.0
  %470 = vmatpush1.msra.mxu0 0.0
  %471 = vmatprep.subr.mxu0 0.0
  %472 = vmatpush1.msra.mxu0 0.0
  %473 = vmatprep.subr.mxu0 0.0
  %474 = vmatpush1.msra.mxu0 0.0
  %475 = vmatprep.subr.mxu0 0.0
  %476 = vmatpush1.msra.mxu0 0.0
  %477 = vmatprep.subr.mxu0 0.0
  %478 = vmatpush1.msra.mxu0 0.0
  %479 = vmatprep.subr.mxu0 0.0
  %480 = vmatpush1.msra.mxu0 0.0
  %481 = vmatprep.subr.mxu0 0.0
  %482 = vmatpush1.msra.mxu0 0.0
  %483 = vmatprep.subr.mxu0 0.0
  %484 = vmatpush1.msra.mxu0 0.0
  %485 = vmatprep.subr.mxu0 0.0
  %486 = vmatpush1.msra.mxu0 0.0
  %487 = vmatprep.subr.mxu0 0.0
  %488 = vmatpush1.msra.mxu0 0.0
  %489 = vmatprep.subr.mxu0 0.0
  %490 = vmatpush1.msra.mxu0 0.0
  %491 = vmatprep.subr.mxu0 0.0
  %492 = vmatpush1.msra.mxu0 0.0
  %493 = vmatprep.subr.mxu0 0.0
  %494 = vmatpush1.msra.mxu0 0.0
  %495 = vmatprep.subr.mxu0 0.0
  %496 = vmatpush1.msra.mxu0 0.0
  %497 = vmatprep.subr.mxu0 0.0
  %498 = vmatpush1.msra.mxu0 0.0
  %499 = vmatprep.subr.mxu0 0.0
  %500 = vmatpush1.msra.mxu0 0.0
  %501 = vmatprep.subr.mxu0 0.0
  %502 = vmatpush1.msra.mxu0 0.0
  %503 = vmatprep.subr.mxu0 0.0
  %504 = vmatpush1.msra.mxu0 0.0
  %505 = vmatprep.subr.mxu0 0.0
  %506 = vmatpush1.msra.mxu0 0.0
  %507 = vmatprep.subr.mxu0 0.0
  %508 = vmatpush1.msra.mxu0 0.0
  %509 = vmatprep.subr.mxu0 0.0
  %510 = vmatpush1.msra.mxu0 0.0
  %511 = vmatprep.subr.mxu0 0.0
  %512 = vmatpush1.msra.mxu0 0.0
  %513 = vmatprep.subr.mxu0 0.0
  %514 = vmatpush1.msra.mxu0 0.0
  %515 = vmatprep.subr.mxu0 0.0
  %516 = vmatpush1.msra.mxu0 0.0
  %517 = vmatprep.subr.mxu0 0.0
  %518 = vmatpush1.msra.mxu0 0.0
  %519 = vmatprep.subr.mxu0 0.0
  %520 = vmatpush1.msra.mxu0 0.0
  %521 = vmatprep.subr.mxu0 0.0
  %522 = vmatpush1.msra.mxu0 0.0
  %523 = vmatprep.subr.mxu0 0.0
  %524 = vmatpush1.msra.mxu0 0.0
  %525 = vmatprep.subr.mxu0 0.0
  %526 = vmatpush1.msra.mxu0 0.0
  %527 = vmatprep.mubr.f32.mxu0 0.0
  %528 = vmatmul.mubr.f32.gmra.mrb[0].mxu0 %v461
  %v529 = vpop.f32.mrb[0].mxu0
  %v530 = vadd.f32 0.0, %v529
  %v531 = vpop.f32.mrb[0].mxu0
  %532 = vdwg.mxu0
  %v533 = vlaneseq
  %v534 = vshrl.u32 %v533, 7
  %v535 = vsub.s32 1, %v534
  %v536 = vrot.slane %v288, %v535
  %538 = vrot.lane.b32.xlu0 %v536, 97
  %v539 = vpop.permute.xlu0 %538
  %v541 = vadd.f32 %v530, %v539
  %v542 = vtanh.pop %v541
  %v543 = vlaneseq
  %v544 = vshrl.u32 %v543, 7
  %v545 = vsub.s32 1, %v544
  %v546 = vrot.slane %v337, %v545
  %548 = vset.pattern.permute.xlu0 1
  %549 = vperm.xlu0 %548, %v542
  %v550 = vpop.permute.xlu0 %549
  %v552 = vmul.f32 %v546, %v550
  %v553 = vadd.f32 %v446, %v552
  %v554 = vmul.f32 %v542, %v542
  %v555 = vsub.f32 1.0, %v554
  %v556 = vlaneseq
  %v557 = vshrl.u32 %v556, 7
  %v558 = vsub.s32 1, %v557
  %v559 = vrot.slane %v349, %v558
  %v560 = vmul.f32 %v555, %v559
  %v561 = vadd.f32 %v560, 1.0
  %v562 = vand.u32 2147483647, %v561
  %v563 = vadd.f32 %v562, 1e-08
  %v564 = vlog2.pop %v563
  %v565 = vmul.f32 %v564, 0.6931472
  %567 = vrot.lane.b32.xlu0 %v565, 127
  %v568 = vpop.permute.xlu0 %567
  %v570 = vadd.f32 %v459, %v568
  %v571 = vadd.f32 %v272, 1e-08
  %v572 = vmul.f32 %v571, 0.5
  %v573 = vsub.f32 -0.9189385, %v572
  %v574 = vmul.f32 %v13, %v13
  %v575 = vmul.f32 %v574, 0.5
  %577 = vrot.lane.b32.xlu0 %v575, 16
  %v578 = vpop.permute.xlu0 %577
  %v580 = vsub.f32 %v573, %v578
  %582 = vrot.lane.b32.xlu0 %v580, 112
  %v583 = vpop.permute.xlu0 %582
  %v585 = vsel %vm352, %v583, 0.0
  %586 = vadd.xlane.f32.xlu0 %v585
  %v587 = vpop.xlane.xlu0 %586
  %v588 = vsub.f32 %v587, %v570
  %v589 = vmul.f32 %v553, %v553
  %v590 = vadd.f32 %v589, 1e-08
  %v591 = vmul.f32 %v590, 0.5
  %v592 = vsub.f32 -0.9189385, %v591
  %v593 = vsel %vm352, %v592, 0.0
  %594 = vadd.xlane.f32.xlu0 %v593
  %v595 = vpop.xlane.xlu0 %594
  %v596 = vld [vmem:[%s1 + $0xc0] sm:$0xff]
  %v597 = vld [vmem:[%s1 + $0xc8] sm:$0xff]
  %v598 = vld [vmem:[%s1 + $0x178] sm:$0x1]
  %v599 = vlaneseq
  %v600 = vshrl.u32 %v599, 7
  %v601 = vsub.s32 0, %v600
  %v602 = vrot.slane %v598, %v601
  %v604 = vsel %vm352, %v553, 0
  %606 = vmatprep.subr.mxu0 0.0
  %607 = vmatpush1.msra.mxu0 %v596
  %608 = vmatprep.subr.mxu0 0.0
  %609 = vmatpush1.msra.mxu0 %v597
  %610 = vmatprep.subr.mxu0 0.0
  %611 = vmatpush1.msra.mxu0 0.0
  %612 = vmatprep.subr.mxu0 0.0
  %613 = vmatpush1.msra.mxu0 0.0
  %614 = vmatprep.subr.mxu0 0.0
  %615 = vmatpush1.msra.mxu0 0.0
  %616 = vmatprep.subr.mxu0 0.0
  %617 = vmatpush1.msra.mxu0 0.0
  %618 = vmatprep.subr.mxu0 0.0
  %619 = vmatpush1.msra.mxu0 0.0
  %620 = vmatprep.subr.mxu0 0.0
  %621 = vmatpush1.msra.mxu0 0.0
  %622 = vmatprep.subr.mxu0 0.0
  %623 = vmatpush1.msra.mxu0 0.0
  %624 = vmatprep.subr.mxu0 0.0
  %625 = vmatpush1.msra.mxu0 0.0
  %626 = vmatprep.subr.mxu0 0.0
  %627 = vmatpush1.msra.mxu0 0.0
  %628 = vmatprep.subr.mxu0 0.0
  %629 = vmatpush1.msra.mxu0 0.0
  %630 = vmatprep.subr.mxu0 0.0
  %631 = vmatpush1.msra.mxu0 0.0
  %632 = vmatprep.subr.mxu0 0.0
  %633 = vmatpush1.msra.mxu0 0.0
  %634 = vmatprep.subr.mxu0 0.0
  %635 = vmatpush1.msra.mxu0 0.0
  %636 = vmatprep.subr.mxu0 0.0
  %637 = vmatpush1.msra.mxu0 0.0
  %638 = vmatprep.subr.mxu0 0.0
  %639 = vmatpush1.msra.mxu0 0.0
  %640 = vmatprep.subr.mxu0 0.0
  %641 = vmatpush1.msra.mxu0 0.0
  %642 = vmatprep.subr.mxu0 0.0
  %643 = vmatpush1.msra.mxu0 0.0
  %644 = vmatprep.subr.mxu0 0.0
  %645 = vmatpush1.msra.mxu0 0.0
  %646 = vmatprep.subr.mxu0 0.0
  %647 = vmatpush1.msra.mxu0 0.0
  %648 = vmatprep.subr.mxu0 0.0
  %649 = vmatpush1.msra.mxu0 0.0
  %650 = vmatprep.subr.mxu0 0.0
  %651 = vmatpush1.msra.mxu0 0.0
  %652 = vmatprep.subr.mxu0 0.0
  %653 = vmatpush1.msra.mxu0 0.0
  %654 = vmatprep.subr.mxu0 0.0
  %655 = vmatpush1.msra.mxu0 0.0
  %656 = vmatprep.subr.mxu0 0.0
  %657 = vmatpush1.msra.mxu0 0.0
  %658 = vmatprep.subr.mxu0 0.0
  %659 = vmatpush1.msra.mxu0 0.0
  %660 = vmatprep.subr.mxu0 0.0
  %661 = vmatpush1.msra.mxu0 0.0
  %662 = vmatprep.subr.mxu0 0.0
  %663 = vmatpush1.msra.mxu0 0.0
  %664 = vmatprep.subr.mxu0 0.0
  %665 = vmatpush1.msra.mxu0 0.0
  %666 = vmatprep.subr.mxu0 0.0
  %667 = vmatpush1.msra.mxu0 0.0
  %668 = vmatprep.subr.mxu0 0.0
  %669 = vmatpush1.msra.mxu0 0.0
  %670 = vmatprep.mubr.f32.mxu0 0.0
  %671 = vmatmul.mubr.f32.gmra.mrb[0].mxu0 %v604
  %v672 = vpop.f32.mrb[0].mxu0
  %v673 = vadd.f32 %v602, %v672
  %v674 = vpop.f32.mrb[0].mxu0
  %675 = vdwg.mxu0
  %v676 = vmax.f32 %v673, 0.0
  %v677 = vld [vmem:[%s1 + $0xd0] sm:$0xff]
  %v678 = vld [vmem:[%s1 + $0xd8] sm:$0xff]
  %v679 = vld [vmem:[%s1 + $0xe0] sm:$0xff]
  %v680 = vld [vmem:[%s1 + $0xe8] sm:$0xff]
  %v681 = vld [vmem:[%s1 + $0xf0] sm:$0xff]
  %v682 = vld [vmem:[%s1 + $0xf8] sm:$0xff]
  %v683 = vld [vmem:[%s1 + $0x100] sm:$0xff]
  %v684 = vld [vmem:[%s1 + $0x108] sm:$0xff]
  %v685 = vld [vmem:[%s1 + $0x180] sm:$0x1]
  %v686 = vlaneseq
  %v687 = vshrl.u32 %v686, 7
  %v688 = vsub.s32 0, %v687
  %v689 = vrot.slane %v685, %v688
  %v691 = vsel %vm27, %v676, 0
  %693 = vmatprep.subr.mxu0 0.0
  %694 = vmatpush1.msra.mxu0 %v677
  %695 = vmatprep.subr.mxu0 0.0
  %696 = vmatpush1.msra.mxu0 %v678
  %697 = vmatprep.subr.mxu0 0.0
  %698 = vmatpush1.msra.mxu0 %v679
  %699 = vmatprep.subr.mxu0 0.0
  %700 = vmatpush1.msra.mxu0 %v680
  %701 = vmatprep.subr.mxu0 0.0
  %702 = vmatpush1.msra.mxu0 %v681
  %703 = vmatprep.subr.mxu0 0.0
  %704 = vmatpush1.msra.mxu0 %v682
  %705 = vmatprep.subr.mxu0 0.0
  %706 = vmatpush1.msra.mxu0 %v683
  %707 = vmatprep.subr.mxu0 0.0
  %708 = vmatpush1.msra.mxu0 %v684
  %709 = vmatprep.subr.mxu0 0.0
  %710 = vmatpush1.msra.mxu0 0.0
  %711 = vmatprep.subr.mxu0 0.0
  %712 = vmatpush1.msra.mxu0 0.0
  %713 = vmatprep.subr.mxu0 0.0
  %714 = vmatpush1.msra.mxu0 0.0
  %715 = vmatprep.subr.mxu0 0.0
  %716 = vmatpush1.msra.mxu0 0.0
  %717 = vmatprep.subr.mxu0 0.0
  %718 = vmatpush1.msra.mxu0 0.0
  %719 = vmatprep.subr.mxu0 0.0
  %720 = vmatpush1.msra.mxu0 0.0
  %721 = vmatprep.subr.mxu0 0.0
  %722 = vmatpush1.msra.mxu0 0.0
  %723 = vmatprep.subr.mxu0 0.0
  %724 = vmatpush1.msra.mxu0 0.0
  %725 = vmatprep.subr.mxu0 0.0
  %726 = vmatpush1.msra.mxu0 0.0
  %727 = vmatprep.subr.mxu0 0.0
  %728 = vmatpush1.msra.mxu0 0.0
  %729 = vmatprep.subr.mxu0 0.0
  %730 = vmatpush1.msra.mxu0 0.0
  %731 = vmatprep.subr.mxu0 0.0
  %732 = vmatpush1.msra.mxu0 0.0
  %733 = vmatprep.subr.mxu0 0.0
  %734 = vmatpush1.msra.mxu0 0.0
  %735 = vmatprep.subr.mxu0 0.0
  %736 = vmatpush1.msra.mxu0 0.0
  %737 = vmatprep.subr.mxu0 0.0
  %738 = vmatpush1.msra.mxu0 0.0
  %739 = vmatprep.subr.mxu0 0.0
  %740 = vmatpush1.msra.mxu0 0.0
  %741 = vmatprep.subr.mxu0 0.0
  %742 = vmatpush1.msra.mxu0 0.0
  %743 = vmatprep.subr.mxu0 0.0
  %744 = vmatpush1.msra.mxu0 0.0
  %745 = vmatprep.subr.mxu0 0.0
  %746 = vmatpush1.msra.mxu0 0.0
  %747 = vmatprep.subr.mxu0 0.0
  %748 = vmatpush1.msra.mxu0 0.0
  %749 = vmatprep.subr.mxu0 0.0
  %750 = vmatpush1.msra.mxu0 0.0
  %751 = vmatprep.subr.mxu0 0.0
  %752 = vmatpush1.msra.mxu0 0.0
  %753 = vmatprep.subr.mxu0 0.0
  %754 = vmatpush1.msra.mxu0 0.0
  %755 = vmatprep.subr.mxu0 0.0
  %756 = vmatpush1.msra.mxu0 0.0
  %757 = vmatprep.mubr.f32.mxu0 0.0
  %758 = vmatmul.mubr.f32.gmra.mrb[0].mxu0 %v691
  %v759 = vpop.f32.mrb[0].mxu0
  %v760 = vadd.f32 %v689, %v759
  %v761 = vpop.f32.mrb[0].mxu0
  %762 = vdwg.mxu0
  %v763 = vmax.f32 %v760, 0.0
  %v764 = vld [vmem:[%s1 + $0x110] sm:$0xff]
  %v765 = vld [vmem:[%s1 + $0x118] sm:$0xff]
  %v766 = vld [vmem:[%s1 + $0x120] sm:$0xff]
  %v767 = vld [vmem:[%s1 + $0x128] sm:$0xff]
  %v768 = vld [vmem:[%s1 + $0x130] sm:$0xff]
  %v769 = vld [vmem:[%s1 + $0x138] sm:$0xff]
  %v770 = vld [vmem:[%s1 + $0x140] sm:$0xff]
  %v771 = vld [vmem:[%s1 + $0x148] sm:$0xff]
  %v772 = vld [vmem:[%s1 + $0x188] sm:$0x1]
  %v773 = vlaneseq
  %v774 = vshrl.u32 %v773, 7
  %v775 = vsub.s32 0, %v774
  %v776 = vrot.slane %v772, %v775
  %v778 = vsel %vm27, %v763, 0
  %780 = vmatprep.subr.mxu0 0.0
  %781 = vmatpush1.msra.mxu0 %v764
  %782 = vmatprep.subr.mxu0 0.0
  %783 = vmatpush1.msra.mxu0 %v765
  %784 = vmatprep.subr.mxu0 0.0
  %785 = vmatpush1.msra.mxu0 %v766
  %786 = vmatprep.subr.mxu0 0.0
  %787 = vmatpush1.msra.mxu0 %v767
  %788 = vmatprep.subr.mxu0 0.0
  %789 = vmatpush1.msra.mxu0 %v768
  %790 = vmatprep.subr.mxu0 0.0
  %791 = vmatpush1.msra.mxu0 %v769
  %792 = vmatprep.subr.mxu0 0.0
  %793 = vmatpush1.msra.mxu0 %v770
  %794 = vmatprep.subr.mxu0 0.0
  %795 = vmatpush1.msra.mxu0 %v771
  %796 = vmatprep.subr.mxu0 0.0
  %797 = vmatpush1.msra.mxu0 0.0
  %798 = vmatprep.subr.mxu0 0.0
  %799 = vmatpush1.msra.mxu0 0.0
  %800 = vmatprep.subr.mxu0 0.0
  %801 = vmatpush1.msra.mxu0 0.0
  %802 = vmatprep.subr.mxu0 0.0
  %803 = vmatpush1.msra.mxu0 0.0
  %804 = vmatprep.subr.mxu0 0.0
  %805 = vmatpush1.msra.mxu0 0.0
  %806 = vmatprep.subr.mxu0 0.0
  %807 = vmatpush1.msra.mxu0 0.0
  %808 = vmatprep.subr.mxu0 0.0
  %809 = vmatpush1.msra.mxu0 0.0
  %810 = vmatprep.subr.mxu0 0.0
  %811 = vmatpush1.msra.mxu0 0.0
  %812 = vmatprep.subr.mxu0 0.0
  %813 = vmatpush1.msra.mxu0 0.0
  %814 = vmatprep.subr.mxu0 0.0
  %815 = vmatpush1.msra.mxu0 0.0
  %816 = vmatprep.subr.mxu0 0.0
  %817 = vmatpush1.msra.mxu0 0.0
  %818 = vmatprep.subr.mxu0 0.0
  %819 = vmatpush1.msra.mxu0 0.0
  %820 = vmatprep.subr.mxu0 0.0
  %821 = vmatpush1.msra.mxu0 0.0
  %822 = vmatprep.subr.mxu0 0.0
  %823 = vmatpush1.msra.mxu0 0.0
  %824 = vmatprep.subr.mxu0 0.0
  %825 = vmatpush1.msra.mxu0 0.0
  %826 = vmatprep.subr.mxu0 0.0
  %827 = vmatpush1.msra.mxu0 0.0
  %828 = vmatprep.subr.mxu0 0.0
  %829 = vmatpush1.msra.mxu0 0.0
  %830 = vmatprep.subr.mxu0 0.0
  %831 = vmatpush1.msra.mxu0 0.0
  %832 = vmatprep.subr.mxu0 0.0
  %833 = vmatpush1.msra.mxu0 0.0
  %834 = vmatprep.subr.mxu0 0.0
  %835 = vmatpush1.msra.mxu0 0.0
  %836 = vmatprep.subr.mxu0 0.0
  %837 = vmatpush1.msra.mxu0 0.0
  %838 = vmatprep.subr.mxu0 0.0
  %839 = vmatpush1.msra.mxu0 0.0
  %840 = vmatprep.subr.mxu0 0.0
  %841 = vmatpush1.msra.mxu0 0.0
  %842 = vmatprep.subr.mxu0 0.0
  %843 = vmatpush1.msra.mxu0 0.0
  %844 = vmatprep.mubr.f32.mxu0 0.0
  %845 = vmatmul.mubr.f32.gmra.mrb[0].mxu0 %v778
  %v846 = vpop.f32.mrb[0].mxu0
  %v847 = vadd.f32 %v776, %v846
  %v848 = vpop.f32.mrb[0].mxu0
  %849 = vdwg.mxu0
  %v850 = vxor.u32 %v847, 2147483648
  %v851 = vmul.f32 %v850, 1.442695
  %v852 = vpow.pop %v851
  %v853 = vadd.f32 %v852, 1.0
  %v854 = vrcp.pop %v853
  %v855 = vmul.f32 1.0, %v854
  %857 = vrot.lane.b32.xlu0 %v588, 64
  %v858 = vpop.permute.xlu0 %857
  %v860 = vsel %vm27, %v855, %v858
  %vm861 = vcmask 531456
  %v862 = vsel %vm861, %v860, %v595
  %vm863 = vcmask 539648
  %v864 = vsel %vm863, %v862, 0.0
  %865 = vst [vmem:[%s2] sm:$0xff] %v864
  // Predicated region
  $region10: #{vae_flows_forward.1} parent=0 // pred_check
    _
  $region11: #{vae_flows_forward.1} parent=0 // pred_check_branch
    %867 = sbr.rel (0) target = $region13
  $region12: #{vae_flows_forward.1} parent=0 // pred_region
    _
  $region13: #{vae_flows_forward.1} parent=0 // pred_fallthru
    _
  // Predicated region
  $region14: #{vae_flows_forward.1} parent=0 // pred_check
    _
  $region15: #{vae_flows_forward.1} parent=0 // pred_check_branch
    %869 = sbr.rel (0) target = $region17
  $region16: #{vae_flows_forward.1} parent=0 // pred_region
    _
  $region17: #{vae_flows_forward.1} parent=0 // pred_fallthru
    _

</llo_original>
